<compile_context>
chip_gen: v5e
topology: v5e:2x2
jax: 0.10.0
libtpu: 0.0.40
codegen_flags: <defaults>
</compile_context>

<pallas_src>
import jax
import jax.numpy as jnp
from jax.experimental import pallas as pl
from jax.experimental.pallas import tpu as pltpu


def _round_up(x, m):
    return ((x + m - 1) // m) * m


def _sub_graph_kernel(x_ref, w1_ref, b1_ref, w2_ref, b2_ref, o_ref):
    # x_ref : [TM, HP]   native dtype (f32/bf16), lane-dense packed rows
    # w1_ref: [HP, HhP]  bf16   (block-diagonal replication of W1)
    # b1_ref: [1,  HhP]  f32
    # w2_ref: [HhP, HP]  bf16   (block-diagonal replication of W2)
    # b2_ref: [1,  HP]   f32
    # o_ref : [TM, HP]   native dtype (same as input)
    x = x_ref[...].astype(jnp.bfloat16)                       # cast folded in-kernel
    h = jnp.dot(x, w1_ref[...], preferred_element_type=jnp.float32) + b1_ref[...]
    h = jnp.maximum(h, 0.0)                                   # relu(l1(x)), f32
    o = jnp.dot(h.astype(jnp.bfloat16), w2_ref[...],
                preferred_element_type=jnp.float32) + b2_ref[...]
    o_ref[...] = jnp.maximum(o, 0.0).astype(o_ref.dtype)      # relu(l2(.))


def pack_params(params):
    """Precompute (once, outside the forward) lane-packed bf16 weights/biases.

    P logical rows of width H are packed into one 128-lane physical row, and the
    weights are replicated block-diagonally so a single MXU matmul handles all P
    packed rows at once (K=128 instead of K=32, lane-dense output).
    """
    H, Hh = params["w1"].shape
    P = 128 // H if (H < 128 and 128 % H == 0) else 1
    eye = jnp.eye(P, dtype=params["w1"].dtype)
    w1_bd = jnp.kron(eye, params["w1"]).astype(jnp.bfloat16)   # [P*H,  P*Hh]
    w2_bd = jnp.kron(eye, params["w2"]).astype(jnp.bfloat16)   # [P*Hh, P*H ]
    b1_t = jnp.tile(params["b1"], (1, P)).astype(jnp.float32)  # [1, P*Hh]
    b2_t = jnp.tile(params["b2"], (1, P)).astype(jnp.float32)  # [1, P*H ]
    return {"P": P, "H": H, "Hh": Hh,
            "w1": w1_bd, "b1": b1_t, "w2": w2_bd, "b2": b2_t}


def sub_graph_forward(hidden_states, lengths, packed, *, tm=4096):
    """hidden_states: [B, S, H]; lengths unused (only printed in the reference)."""
    del lengths  # TODO(synk): reference forward only prints lengths; it never affects the output.
    B, S, H = hidden_states.shape
    assert H == packed["H"], "packed params built for a different hidden size"
    P = packed["P"]
    HP, HhP = P * H, P * packed["Hh"]
    R = B * S

    # Minimal padding: packed rows only up to the sublane multiple (8).
    Rp = -(-R // P)
    Rp_pad = _round_up(max(Rp, 1), 8)
    R_pad = Rp_pad * P

    x2d = hidden_states.reshape(R, H)
    if R_pad != R:
        x2d = jnp.pad(x2d, ((0, R_pad - R), (0, 0)))
    xp = x2d.reshape(Rp_pad, HP)                 # [Rp_pad, 128] lane-dense, native dtype

    # Row tile: large (>= 512 packed rows) for HBM-roofline DMA, but keep ~8 grid
    # steps when the input is big so the "parallel" axis shards across v7x's two
    # TensorCores and double-buffering has depth.
    TM = min(tm, Rp_pad)
    if Rp_pad > 512:
        TM = min(TM, max(512, _round_up(pl.cdiv(Rp_pad, 8), 8)))
    grid = pl.cdiv(Rp_pad, TM)                   # partial last block clipped by Pallas

    out_p = pl.pallas_call(
        _sub_graph_kernel,
        out_shape=jax.ShapeDtypeStruct((Rp_pad, HP), hidden_states.dtype),
        grid_spec=pltpu.PrefetchScalarGridSpec(
            num_scalar_prefetch=0,
            grid=(grid,),
            in_specs=[
                pl.BlockSpec((TM, HP), lambda i: (i, 0)),    # x tile (pipelined)
                pl.BlockSpec((HP, HhP), lambda i: (0, 0)),   # W1 (VMEM-resident)
                pl.BlockSpec((1, HhP), lambda i: (0, 0)),    # b1 (VMEM-resident)
                pl.BlockSpec((HhP, HP), lambda i: (0, 0)),   # W2 (VMEM-resident)
                pl.BlockSpec((1, HP), lambda i: (0, 0)),     # b2 (VMEM-resident)
            ],
            out_specs=pl.BlockSpec((TM, HP), lambda i: (i, 0)),
        ),
        compiler_params=pltpu.CompilerParams(
            dimension_semantics=("parallel",),   # rows independent -> megacore
            vmem_limit_bytes=32 * 1024 * 1024,
        ),
    )(xp, packed["w1"], packed["b1"], packed["w2"], packed["b2"])

    out2d = out_p.reshape(R_pad, H)
    if R_pad != R:
        out2d = out2d[:R]
    return out2d.reshape(B, S, H)


def init_params(key, hidden_size):
    """Deterministic synthetic init matching nn.Linear shapes.

    PyTorch: l1.weight [H//2, H], l1.bias [H//2]; l2.weight [H, H//2], l2.bias [H].
    Stored here already transposed for x @ W layout.
    self.agg (MaxPool1d) and self.l3 (Linear(16, H)) are defined in __init__ but
    never used in forward, so no parameters are needed for them.
    """
    Hh = hidden_size // 2
    k1, k2, k3, k4 = jax.random.split(key, 4)
    lim1 = 1.0 / jnp.sqrt(hidden_size)
    lim2 = 1.0 / jnp.sqrt(Hh)
    w1 = jax.random.uniform(k1, (hidden_size, Hh), jnp.float32, -lim1, lim1)
    b1 = jax.random.uniform(k2, (1, Hh), jnp.float32, -lim1, lim1)
    w2 = jax.random.uniform(k3, (Hh, hidden_size), jnp.float32, -lim2, lim2)
    b2 = jax.random.uniform(k4, (1, hidden_size), jnp.float32, -lim2, lim2)
    return {"w1": w1, "b1": b1, "w2": w2, "b2": b2}


if __name__ == "__main__":
    hidden_size = 32
    batch, seq = 2, 8

    key = jax.random.PRNGKey(0)
    kx, kp = jax.random.split(key)
    hidden_states = jax.random.normal(kx, (batch, seq, hidden_size), jnp.float32)
    lengths = jnp.array([seq, seq], dtype=jnp.int32)

    params = init_params(kp, hidden_size)
    packed = pack_params(params)        # hoisted out of the per-call wrapper

    out = sub_graph_forward(hidden_states, lengths, packed)
    out = jax.block_until_ready(out)
    assert out.shape == (batch, seq, hidden_size)
    assert out.dtype == hidden_states.dtype

    # Reference with the same bf16-operand / f32-accumulate numerics.
    x_bf = hidden_states.reshape(-1, hidden_size).astype(jnp.bfloat16)
    w1_bf = params["w1"].astype(jnp.bfloat16)
    w2_bf = params["w2"].astype(jnp.bfloat16)
    ref = jnp.maximum(
        jnp.dot(x_bf, w1_bf, preferred_element_type=jnp.float32) + params["b1"], 0.0)
    ref = jnp.maximum(
        jnp.dot(ref.astype(jnp.bfloat16), w2_bf,
                preferred_element_type=jnp.float32) + params["b2"], 0.0)
    ref = ref.reshape(batch, seq, hidden_size).astype(out.dtype)
    assert jnp.allclose(out, ref, atol=1e-3, rtol=1e-3), float(
        jnp.max(jnp.abs(out - ref)))

    # Loose sanity check against the full-f32 math of the PyTorch forward.
    ref32 = jnp.maximum(hidden_states @ params["w1"] + params["b1"][0], 0.0)
    ref32 = jnp.maximum(ref32 @ params["w2"] + params["b2"][0], 0.0)
    assert jnp.allclose(out, ref32, atol=5e-2, rtol=5e-2)

    print("KERNEL_OK")
</pallas_src>

<mosaic_0001>
module attributes {stable_mosaic.version = 11 : i64} {
  func.func @_sub_graph_kernel(%arg0: i32, %arg1: memref<8x128xf32, #tpu.memory_space<vmem>>, %arg2: memref<128x64xbf16, #tpu.memory_space<vmem>>, %arg3: memref<1x64xf32, #tpu.memory_space<vmem>>, %arg4: memref<64x128xbf16, #tpu.memory_space<vmem>>, %arg5: memref<1x128xf32, #tpu.memory_space<vmem>>, %arg6: memref<8x128xf32, #tpu.memory_space<vmem>>) attributes {dimension_semantics = [#tpu.dimension_semantics<parallel>], iteration_bounds = array<i64: 1>, scalar_prefetch = 0 : i64, scratch_operands = 0 : i64, tpu.core_type = #tpu.core_type<tc>, window_params = [{transform_indices = @transform_0, window_bounds = array<i64: 8, 128>}, {pipeline_mode = #tpu.pipeline_mode<synchronous>, transform_indices = @transform_1, window_bounds = array<i64: 128, 64>}, {pipeline_mode = #tpu.pipeline_mode<synchronous>, transform_indices = @transform_2, window_bounds = array<i64: 1, 64>}, {pipeline_mode = #tpu.pipeline_mode<synchronous>, transform_indices = @transform_3, window_bounds = array<i64: 64, 128>}, {pipeline_mode = #tpu.pipeline_mode<synchronous>, transform_indices = @transform_4, window_bounds = array<i64: 1, 128>}, {transform_indices = @transform_5, window_bounds = array<i64: 8, 128>}]} {
    %c0 = arith.constant 0 : index
    %c0_0 = arith.constant 0 : index
    %0 = vector.load %arg1[%c0, %c0_0] : memref<8x128xf32, #tpu.memory_space<vmem>>, vector<8x128xf32>
    %1 = arith.truncf %0 : vector<8x128xf32> to vector<8x128xbf16>
    %c0_1 = arith.constant 0 : index
    %c0_2 = arith.constant 0 : index
    %2 = vector.load %arg2[%c0_1, %c0_2] : memref<128x64xbf16, #tpu.memory_space<vmem>>, vector<128x64xbf16>
    %cst = arith.constant dense<0.000000e+00> : vector<8x64xf32>
    %3 = tpu.matmul %1, %2, %cst {dimension_numbers = #tpu.dot_dimension_numbers<[1], [0], [0], [1], [0, 0, 1, 1], [], []>} : vector<8x128xbf16>, vector<128x64xbf16>, vector<8x64xf32> -> vector<8x64xf32>
    %c0_3 = arith.constant 0 : index
    %c0_4 = arith.constant 0 : index
    %4 = vector.load %arg3[%c0_3, %c0_4] : memref<1x64xf32, #tpu.memory_space<vmem>>, vector<1x64xf32>
    %5 = vector.broadcast %4 : vector<1x64xf32> to vector<8x64xf32>
    %6 = arith.addf %3, %5 : vector<8x64xf32>
    %cst_5 = arith.constant 0.000000e+00 : f32
    %7 = vector.broadcast %cst_5 : f32 to vector<8x64xf32>
    %8 = arith.maximumf %6, %7 : vector<8x64xf32>
    %9 = arith.truncf %8 : vector<8x64xf32> to vector<8x64xbf16>
    %c0_6 = arith.constant 0 : index
    %c0_7 = arith.constant 0 : index
    %10 = vector.load %arg4[%c0_6, %c0_7] : memref<64x128xbf16, #tpu.memory_space<vmem>>, vector<64x128xbf16>
    %cst_8 = arith.constant dense<0.000000e+00> : vector<8x128xf32>
    %11 = tpu.matmul %9, %10, %cst_8 {dimension_numbers = #tpu.dot_dimension_numbers<[1], [0], [0], [1], [0, 0, 1, 1], [], []>} : vector<8x64xbf16>, vector<64x128xbf16>, vector<8x128xf32> -> vector<8x128xf32>
    %c0_9 = arith.constant 0 : index
    %c0_10 = arith.constant 0 : index
    %12 = vector.load %arg5[%c0_9, %c0_10] : memref<1x128xf32, #tpu.memory_space<vmem>>, vector<1x128xf32>
    %13 = vector.broadcast %12 : vector<1x128xf32> to vector<8x128xf32>
    %14 = arith.addf %11, %13 : vector<8x128xf32>
    %cst_11 = arith.constant 0.000000e+00 : f32
    %15 = vector.broadcast %cst_11 : f32 to vector<8x128xf32>
    %16 = arith.maximumf %14, %15 : vector<8x128xf32>
    %c0_12 = arith.constant 0 : index
    %c0_13 = arith.constant 0 : index
    %17 = vector.load %arg6[%c0_12, %c0_13] : memref<8x128xf32, #tpu.memory_space<vmem>>, vector<8x128xf32>
    tpu.vector_store %arg6[%c0_12, %c0_13], %16 {strides = array<i32>} : memref<8x128xf32, #tpu.memory_space<vmem>>, vector<8x128xf32>,
    return
  }
  func.func @transform_0(%arg0: i32) -> (i32, i32) {
    %c0_i32 = arith.constant 0 : i32
    %c0_i32_0 = arith.constant 0 : i32
    return %arg0, %c0_i32 : i32, i32
  }
  func.func @transform_1(%arg0: i32) -> (i32, i32) {
    %c0_i32 = arith.constant 0 : i32
    %c0_i32_0 = arith.constant 0 : i32
    %c0_i32_1 = arith.constant 0 : i32
    return %c0_i32, %c0_i32_0 : i32, i32
  }
  func.func @transform_2(%arg0: i32) -> (i32, i32) {
    %c0_i32 = arith.constant 0 : i32
    %c0_i32_0 = arith.constant 0 : i32
    %c0_i32_1 = arith.constant 0 : i32
    return %c0_i32, %c0_i32_0 : i32, i32
  }
  func.func @transform_3(%arg0: i32) -> (i32, i32) {
    %c0_i32 = arith.constant 0 : i32
    %c0_i32_0 = arith.constant 0 : i32
    %c0_i32_1 = arith.constant 0 : i32
    return %c0_i32, %c0_i32_0 : i32, i32
  }
  func.func @transform_4(%arg0: i32) -> (i32, i32) {
    %c0_i32 = arith.constant 0 : i32
    %c0_i32_0 = arith.constant 0 : i32
    %c0_i32_1 = arith.constant 0 : i32
    return %c0_i32, %c0_i32_0 : i32, i32
  }
  func.func @transform_5(%arg0: i32) -> (i32, i32) {
    %c0_i32 = arith.constant 0 : i32
    %c0_i32_0 = arith.constant 0 : i32
    return %arg0, %c0_i32 : i32, i32
  }
}

</mosaic_0001>

<llo_original>
// kernel: tpu_custom_call.1
$region0: #{tpu_custom_call.1}
  #allocation0 [shape = 'u32[]', space=smem, size = 0x4, offset = 0x4, fixed_abs, tag = 'smem constant byte address 0x4 - core index']
  #allocation1 [shape = 'u32[72,128]{1,0:T(1,128)}', space=vmem, size = 0x9000, scoped, tag = 'internal scratch']
  %s0 = inlined_call_operand.vmem [shape: f32[8,128], index: 0, kind: input, shape index: {}]
  %s1 = inlined_call_operand.vmem [shape: bf16[128,64], index: 1, kind: input, shape index: {}]
  %s2 = inlined_call_operand.vmem [shape: f32[1,64], index: 2, kind: input, shape index: {}]
  %s3 = inlined_call_operand.vmem [shape: bf16[64,128], index: 3, kind: input, shape index: {}]
  %s4 = inlined_call_operand.vmem [shape: f32[1,128], index: 4, kind: input, shape index: {}]
  %s5 = inlined_call_operand.hbm [shape: f32[8,128], index: 5, kind: output, shape index: {}]
  %s6 = sld [smem:[#allocation0]]
  $region30: #{tpu_custom_call.1} parent=0
    _
  %s8 = ssub.s32 1, %s6
  %s9 = scalar_select 0, %s8, %s6
  $region1: #{tpu_custom_call.1} parent=0
    #allocation2 [shape = 'u8[4096]{0}', space=vmem, size = 0x1000, scoped, tag = 'output window, operand 0, single buffered']
    #allocation3 [shape = 's32[1]{0}', space=sflag, size = 0x4, scoped, tag = 'scoped memory for tpu_custom_call.1']
    %10 = vsyncpa [#allocation3], 0
    // Predicated region
    $region2: #{tpu_custom_call.1} parent=1 // pred_check
      _
    $region3: #{tpu_custom_call.1} parent=1 // pred_check_branch
      %12 = sbr.rel (0) target = $region5
    $region4: #{tpu_custom_call.1} parent=1 // pred_region
      _
    $region5: #{tpu_custom_call.1} parent=1 // pred_fallthru
      _
    // Predicated region
    $region6: #{tpu_custom_call.1} parent=1 // pred_check
      _
    $region7: #{tpu_custom_call.1} parent=1 // pred_check_branch
      %14 = sbr.rel (0) target = $region9
    $region8: #{tpu_custom_call.1} parent=1 // pred_region
      _
    $region9: #{tpu_custom_call.1} parent=1 // pred_fallthru
      _
    // Predicated region
    $region10: #{tpu_custom_call.1} parent=1 // pred_check
      _
    $region11: #{tpu_custom_call.1} parent=1 // pred_check_branch
      %16 = sbr.rel (0) target = $region13
    $region12: #{tpu_custom_call.1} parent=1 // pred_region
      _
    $region13: #{tpu_custom_call.1} parent=1 // pred_fallthru
      _
    // Predicated region
    $region14: #{tpu_custom_call.1} parent=1 // pred_check
      _
    $region15: #{tpu_custom_call.1} parent=1 // pred_check_branch
      %18 = sbr.rel (0) target = $region17
    $region16: #{tpu_custom_call.1} parent=1 // pred_region
      _
    $region17: #{tpu_custom_call.1} parent=1 // pred_fallthru
      _
    // Predicated region
    $region18: #{tpu_custom_call.1} parent=1 // pred_check
      _
    $region19: #{tpu_custom_call.1} parent=1 // pred_check_branch
      %20 = sbr.rel (0) target = $region21
    $region20: #{tpu_custom_call.1} parent=1 // pred_region
      _
    $region21: #{tpu_custom_call.1} parent=1 // pred_fallthru
      _
    %v22 = vld [vmem:[%s0] sm:$0xff]
    %v23 = vpack.c.bf16 %v22, %v22
    %v24 = vld [vmem:[%s1] sm:$0xf]
    %v25 = vld [vmem:[%s1 + $0x4] sm:$0xf]
    %v26 = vld [vmem:[%s1 + $0x8] sm:$0xf]
    %v27 = vld [vmem:[%s1 + $0xc] sm:$0xf]
    %v28 = vld [vmem:[%s1 + $0x10] sm:$0xf]
    %v29 = vld [vmem:[%s1 + $0x14] sm:$0xf]
    %v30 = vld [vmem:[%s1 + $0x18] sm:$0xf]
    %v31 = vld [vmem:[%s1 + $0x1c] sm:$0xf]
    %v32 = vld [vmem:[%s1 + $0x20] sm:$0xf]
    %v33 = vld [vmem:[%s1 + $0x24] sm:$0xf]
    %v34 = vld [vmem:[%s1 + $0x28] sm:$0xf]
    %v35 = vld [vmem:[%s1 + $0x2c] sm:$0xf]
    %v36 = vld [vmem:[%s1 + $0x30] sm:$0xf]
    %v37 = vld [vmem:[%s1 + $0x34] sm:$0xf]
    %v38 = vld [vmem:[%s1 + $0x38] sm:$0xf]
    %v39 = vld [vmem:[%s1 + $0x3c] sm:$0xf]
    %v40 = vld [vmem:[%s2] sm:$0x1]
    %v42 = vperm.slane %v40, 0
    %v60 = vunpack.c.l.b16 %v24
    %v61 = vunpack.c.l.b16 %v25
    %v62 = vunpack.c.l.b16 %v26
    %v63 = vunpack.c.l.b16 %v27
    %v64 = vunpack.c.l.b16 %v28
    %v65 = vunpack.c.l.b16 %v29
    %v66 = vunpack.c.l.b16 %v30
    %v67 = vunpack.c.l.b16 %v31
    %v68 = vunpack.c.l.b16 %v32
    %v69 = vunpack.c.l.b16 %v33
    %v70 = vunpack.c.l.b16 %v34
    %v71 = vunpack.c.l.b16 %v35
    %v72 = vunpack.c.l.b16 %v36
    %v73 = vunpack.c.l.b16 %v37
    %v74 = vunpack.c.l.b16 %v38
    %v75 = vunpack.c.l.b16 %v39
    %v76 = vpack.c.b16 %v61, %v60
    %v77 = vpack.c.b16 %v63, %v62
    %v78 = vpack.c.b16 %v65, %v64
    %v79 = vpack.c.b16 %v67, %v66
    %v80 = vpack.c.b16 %v69, %v68
    %v81 = vpack.c.b16 %v71, %v70
    %v82 = vpack.c.b16 %v73, %v72
    %v83 = vpack.c.b16 %v75, %v74
    %92 = vmatpush.bf16.msra.mxu0 %v83
    %93 = vmatpush.bf16.msra.mxu0 %v82
    %94 = vmatpush.bf16.msra.mxu0 %v81
    %95 = vmatpush.bf16.msra.mxu0 %v80
    %96 = vmatpush.bf16.msra.mxu0 %v79
    %97 = vmatpush.bf16.msra.mxu0 %v78
    %98 = vmatpush.bf16.msra.mxu0 %v77
    %99 = vmatpush.bf16.msra.mxu0 %v76
    %100 = vmatmul.bf16.gmra.mxu0 %v23
    %v101 = vpop.f32.mrf.mxu0
    %v102 = vadd.f32 %v42, %v101
    %v103 = vpop.f32.mrf.mxu0
    %104 = vdwg.mxu0
    %v105 = vmax.f32 %v102, 0.0
    %v106 = vpack.c.bf16 %v105, %v105
    %v107 = vld [vmem:[%s3] sm:$0xf]
    %v108 = vld [vmem:[%s3 + $0x4] sm:$0xf]
    %v109 = vld [vmem:[%s3 + $0x8] sm:$0xf]
    %v110 = vld [vmem:[%s3 + $0xc] sm:$0xf]
    %v111 = vld [vmem:[%s3 + $0x10] sm:$0xf]
    %v112 = vld [vmem:[%s3 + $0x14] sm:$0xf]
    %v113 = vld [vmem:[%s3 + $0x18] sm:$0xf]
    %v114 = vld [vmem:[%s3 + $0x1c] sm:$0xf]
    %v115 = vld [vmem:[%s4] sm:$0x1]
    %v117 = vperm.slane %v115, 0
    %v127 = vunpack.c.l.b16 %v107
    %v128 = vunpack.c.l.b16 %v108
    %v129 = vunpack.c.l.b16 %v109
    %v130 = vunpack.c.l.b16 %v110
    %v131 = vunpack.c.l.b16 %v111
    %v132 = vunpack.c.l.b16 %v112
    %v133 = vunpack.c.l.b16 %v113
    %v134 = vunpack.c.l.b16 %v114
    %v135 = vpack.c.b16 %v128, %v127
    %v136 = vpack.c.b16 %v130, %v129
    %v137 = vpack.c.b16 %v132, %v131
    %v138 = vpack.c.b16 %v134, %v133
    %vm143 = vcmask 523264
    %v145 = vsel %vm143, %v106, 0
    %147 = vmatpush.bf16.msra.mxu0 0
    %148 = vmatpush.bf16.msra.mxu0 0
    %149 = vmatpush.bf16.msra.mxu0 0
    %150 = vmatpush.bf16.msra.mxu0 0
    %151 = vmatpush.bf16.msra.mxu0 %v138
    %152 = vmatpush.bf16.msra.mxu0 %v137
    %153 = vmatpush.bf16.msra.mxu0 %v136
    %154 = vmatpush.bf16.msra.mxu0 %v135
    %155 = vmatmul.bf16.gmra.mxu0 %v145
    %v156 = vpop.f32.mrf.mxu0
    %v157 = vadd.f32 %v117, %v156
    %v158 = vpop.f32.mrf.mxu0
    %159 = vdwg.mxu0
    %v160 = vmax.f32 %v157, 0.0
    %161 = vst [vmem:[#allocation2] sm:$0xff] %v160
    // Predicated region
    $region22: #{tpu_custom_call.1} parent=1 // pred_check
      _
    $region23: #{tpu_custom_call.1} parent=1 // pred_check_branch
      %163 = sbr.rel (0) target = $region25
    $region24: #{tpu_custom_call.1} parent=1 // pred_region
      %165 = vsyncadd [#allocation3], 0
      %s167 = sshll.u32 [#allocation2], 4
      %s168 = int_to_ptr.vmem [resolvable:$true] %s167
      %s169 = sshll.u32 %s5, 4
      %s170 = int_to_ptr.hbm [resolvable:$true] %s169
      %172 = dma.vmem_to_hbm [thread:$0]  %s168, 128, %s170, [#allocation3]
    $region25: #{tpu_custom_call.1} parent=1 // pred_fallthru
      _
    // Predicated region
    $region26: #{tpu_custom_call.1} parent=1 // pred_check
      _
    $region27: #{tpu_custom_call.1} parent=1 // pred_check_branch
      %174 = sbr.rel (0) target = $region29
    $region28: #{tpu_custom_call.1} parent=1 // pred_region
      %176 = dma.done [#allocation3], 128
    $region29: #{tpu_custom_call.1} parent=1 // pred_fallthru
      _
    %177 = vsyncpa [#allocation3], 1

</llo_original>
